<compile_context>
chip_gen: v7x
topology: tpu7x:2x2x1
jax: 0.10.0
libtpu: 0.0.40
codegen_flags: <defaults>
</compile_context>

<pallas_src>
from functools import partial

import numpy as np
import jax
import jax.numpy as jnp
from jax.experimental import pallas as pl
from jax.experimental.pallas import tpu as pltpu


def _round_up(x, m):
    return ((x + m - 1) // m) * m


# --------------------------------------------------------------------------
# Fused kernel: weighted CE, class error, cardinality counts, L1 + GIoU boxes
#
# Inputs (per grid step b):
#   logits_ref : (1, Q, C1)    model logits (full class dim, no padding)
#   labels_ref : (1, Q, 1)     int32: matched target class, or num_classes (no-object)
#   boxes_ref  : (16, Np)      rows 0-3 src cxcywh, 4-7 tgt cxcywh, 8 validity mask
# Output (one block per b):
#   out_ref    : (1, 8, 128)   row 0 ce_num, 1 ce_den, 2 correct, 3 n_matched,
#                              4 card_count, 5 l1_sum, 6 giou_sum (b==0 only)
# --------------------------------------------------------------------------
def _make_loss_kernel(num_classes, eos_coef):
    def kernel(logits_ref, labels_ref, boxes_ref, out_ref):
        bi = pl.program_id(0)

        logits = logits_ref[0].astype(jnp.float32)          # (Q, C1)
        labels = labels_ref[0]                              # (Q, 1) int32
        q, c1 = logits.shape

        col = jax.lax.broadcasted_iota(jnp.int32, (q, c1), 1)
        label_mask = (col == labels)                        # (Q, C1)

        # ---- weighted log-softmax cross entropy ----
        m = jnp.max(logits, axis=-1, keepdims=True)         # (Q, 1)
        z = logits - m
        lse = jnp.log(jnp.sum(jnp.exp(z), axis=-1, keepdims=True))
        z_at_label = jnp.sum(jnp.where(label_mask, z, 0.0), axis=-1, keepdims=True)
        nll = lse - z_at_label                              # (Q, 1)

        is_noobj = labels == num_classes
        row_w = jnp.where(is_noobj, eos_coef, 1.0).astype(jnp.float32)
        matched = jnp.where(is_noobj, 0.0, 1.0)

        ce_num = jnp.sum(row_w * nll)
        ce_den = jnp.sum(row_w)

        # ---- class error: target logit equals the row max (z_at_label == 0) ----
        correct = jnp.sum(jnp.where(z_at_label >= 0.0, 1.0, 0.0) * matched)
        n_matched = jnp.sum(matched)

        # ---- cardinality: argmax != no-object class ----
        neg = jnp.float32(-1e30)
        noobj_col = (col == num_classes)
        last = jnp.max(jnp.where(noobj_col, logits, neg), axis=-1, keepdims=True)
        rest = jnp.max(jnp.where(noobj_col, neg, logits), axis=-1, keepdims=True)
        n_nonempty = jnp.sum(jnp.where(rest >= last, 1.0, 0.0))

        rows = jax.lax.broadcasted_iota(jnp.int32, (1, 8, 128), 1)
        out_ref[...] = (jnp.where(rows == 0, ce_num, 0.0)
                        + jnp.where(rows == 1, ce_den, 0.0)
                        + jnp.where(rows == 2, correct, 0.0)
                        + jnp.where(rows == 3, n_matched, 0.0)
                        + jnp.where(rows == 4, n_nonempty, 0.0))

        # ---- box losses, computed once (first batch block only) ----
        @pl.when(bi == 0)
        def _boxes():
            bx = boxes_ref[...].astype(jnp.float32)          # (16, Np)
            scx, scy, sw, sh = bx[0:1], bx[1:2], bx[2:3], bx[3:4]
            tcx, tcy, tw, th = bx[4:5], bx[5:6], bx[6:7], bx[7:8]
            msk = bx[8:9]

            l1_sum = jnp.sum((jnp.abs(scx - tcx) + jnp.abs(scy - tcy)
                              + jnp.abs(sw - tw) + jnp.abs(sh - th)) * msk)

            sx0 = scx - 0.5 * sw; sx1 = scx + 0.5 * sw
            sy0 = scy - 0.5 * sh; sy1 = scy + 0.5 * sh
            tx0 = tcx - 0.5 * tw; tx1 = tcx + 0.5 * tw
            ty0 = tcy - 0.5 * th; ty1 = tcy + 0.5 * th
            area_s = (sx1 - sx0) * (sy1 - sy0)
            area_t = (tx1 - tx0) * (ty1 - ty0)
            iw = jnp.maximum(jnp.minimum(sx1, tx1) - jnp.maximum(sx0, tx0), 0.0)
            ih = jnp.maximum(jnp.minimum(sy1, ty1) - jnp.maximum(sy0, ty0), 0.0)
            inter = iw * ih
            union = area_s + area_t - inter
            eps = jnp.float32(1e-7)
            iou = inter / (union + eps)
            cw = jnp.maximum(jnp.maximum(sx1, tx1) - jnp.minimum(sx0, tx0), 0.0)
            ch = jnp.maximum(jnp.maximum(sy1, ty1) - jnp.minimum(sy0, ty0), 0.0)
            area_c = cw * ch
            giou = iou - (area_c - union) / (area_c + eps)
            giou_sum = jnp.sum((1.0 - giou) * msk)

            out_ref[...] += (jnp.where(rows == 5, l1_sum, 0.0)
                             + jnp.where(rows == 6, giou_sum, 0.0))

    return kernel


# --------------------------------------------------------------------------
# Device-side (jitted) loss computation: scatter/gather + pallas_call + epilogue
# --------------------------------------------------------------------------
@partial(jax.jit, static_argnames=("num_classes", "eos_coef"))
def _detr_losses_jit(pred_logits, pred_boxes, batch_idx, src_idx, labels_m,
                     tgt_boxes_m, match_valid, tgt_lengths, num_boxes,
                     *, num_classes, eos_coef):
    B, Q, C1 = pred_logits.shape

    # dense per-query target classes (padded matcher rows use batch_idx == B -> dropped)
    tc = jnp.full((B, Q), num_classes, jnp.int32)
    tc = tc.at[batch_idx, src_idx].set(labels_m.astype(jnp.int32), mode="drop")
    labels = tc[..., None]                                              # (B, Q, 1)

    # matched box gather (stays on device), packed lane-dense as (16, Np)
    Np = batch_idx.shape[0]
    bsafe = jnp.clip(batch_idx, 0, B - 1)
    ssafe = jnp.clip(src_idx, 0, Q - 1)
    src_b = pred_boxes[bsafe, ssafe].astype(jnp.float32)                # (Np, 4)
    boxes_pack = jnp.concatenate([
        src_b.T,
        tgt_boxes_m.astype(jnp.float32).T,
        match_valid.astype(jnp.float32)[None, :],
        jnp.zeros((7, Np), jnp.float32)], axis=0)                       # (16, Np)

    kernel = _make_loss_kernel(num_classes, float(eos_coef))
    partials = pl.pallas_call(
        kernel,
        grid=(B,),
        in_specs=[
            pl.BlockSpec((1, Q, C1), lambda b: (b, 0, 0)),
            pl.BlockSpec((1, Q, 1), lambda b: (b, 0, 0)),
            pl.BlockSpec((16, Np), lambda b: (0, 0)),
        ],
        out_specs=pl.BlockSpec((1, 8, 128), lambda b: (b, 0, 0)),
        out_shape=jax.ShapeDtypeStruct((B, 8, 128), jnp.float32),
        compiler_params=pltpu.CompilerParams(
            dimension_semantics=("parallel",)),
    )(pred_logits, labels, boxes_pack)

    # tiny epilogue: reduce per-batch partial sums
    p = partials[:, :, 0]                                               # (B, 8)
    ce_num, ce_den = jnp.sum(p[:, 0]), jnp.sum(p[:, 1])
    correct, n_matched = jnp.sum(p[:, 2]), jnp.sum(p[:, 3])
    card_pred = p[:, 4]
    l1_sum, giou_sum = jnp.sum(p[:, 5]), jnp.sum(p[:, 6])

    loss_ce = ce_num / jnp.maximum(ce_den, 1e-12)
    class_error = 100.0 - 100.0 * correct / jnp.maximum(n_matched, 1.0)
    cardinality_error = jnp.mean(jnp.abs(card_pred - tgt_lengths))
    loss_bbox = l1_sum / num_boxes
    loss_giou = giou_sum / num_boxes
    return {
        "loss_ce": loss_ce,
        "class_error": class_error,
        "cardinality_error": cardinality_error,
        "loss_bbox": loss_bbox,
        "loss_giou": loss_giou,
    }


# --------------------------------------------------------------------------
# Public wrapper: host only touches the (small, host-produced) matcher indices
# --------------------------------------------------------------------------
def detr_set_criterion(pred_logits, pred_boxes, targets, indices, *, num_classes, eos_coef):
    B = len(targets)
    batch_l, src_l, lbl_l, tbox_l = [], [], [], []
    for b, (si, ti) in enumerate(indices):
        si = np.asarray(si, np.int32)
        ti = np.asarray(ti, np.int32)
        batch_l.append(np.full(si.shape, b, np.int32))
        src_l.append(si)
        lbl_l.append(np.asarray(targets[b]["labels"], np.int32)[ti])
        tbox_l.append(np.asarray(targets[b]["boxes"], np.float32).reshape(-1, 4)[ti])

    if batch_l and sum(a.size for a in batch_l) > 0:
        batch_idx = np.concatenate(batch_l)
        src_idx = np.concatenate(src_l)
        labels_m = np.concatenate(lbl_l)
        tgt_boxes_m = np.concatenate(tbox_l, axis=0)
    else:
        batch_idx = np.zeros((0,), np.int32)
        src_idx = np.zeros((0,), np.int32)
        labels_m = np.zeros((0,), np.int32)
        tgt_boxes_m = np.zeros((0, 4), np.float32)

    N = int(batch_idx.shape[0])
    Np = max(_round_up(max(N, 1), 128), 128)
    pad = Np - N
    batch_idx = np.concatenate([batch_idx, np.full((pad,), B, np.int32)])   # OOB -> dropped scatter
    src_idx = np.concatenate([src_idx, np.zeros((pad,), np.int32)])
    labels_m = np.concatenate([labels_m, np.zeros((pad,), np.int32)])
    tgt_boxes_m = np.concatenate([tgt_boxes_m, np.zeros((pad, 4), np.float32)], axis=0)
    match_valid = np.concatenate([np.ones((N,), np.float32), np.zeros((pad,), np.float32)])
    tgt_lengths = np.array([len(t["labels"]) for t in targets], np.float32)
    # num_boxes: sum of target lengths, clamped at 1 (reference semantics)
    # TODO(synk): all_reduce over world_size omitted
    num_boxes = np.float32(max(float(tgt_lengths.sum()), 1.0))

    return _detr_losses_jit(
        jnp.asarray(pred_logits), jnp.asarray(pred_boxes),
        jnp.asarray(batch_idx), jnp.asarray(src_idx), jnp.asarray(labels_m),
        jnp.asarray(tgt_boxes_m), jnp.asarray(match_valid),
        jnp.asarray(tgt_lengths), jnp.asarray(num_boxes),
        num_classes=num_classes, eos_coef=float(eos_coef))


# --------------------------------------------------------------------------
# Pure-numpy reference (mirrors the PyTorch semantics) for a sanity check
# --------------------------------------------------------------------------
def reference_losses(pred_logits, pred_boxes, targets, indices, num_classes, eos_coef):
    logits = np.asarray(pred_logits, np.float64)
    boxes_pred = np.asarray(pred_boxes, np.float64)
    B, Q, C1 = logits.shape
    target_classes = np.full((B, Q), num_classes, np.int64)
    src_l, tgt_l, mlog, mtgt = [], [], [], []
    for b, (si, ti) in enumerate(indices):
        labels = np.asarray(targets[b]["labels"])
        target_classes[b, si] = labels[ti]
        src_l.append(boxes_pred[b, si])
        tgt_l.append(np.asarray(targets[b]["boxes"], np.float64)[ti])
        mlog.append(logits[b, si])
        mtgt.append(labels[ti])
    ew = np.ones(C1); ew[-1] = eos_coef
    m = logits.max(-1, keepdims=True)
    logp = logits - m - np.log(np.exp(logits - m).sum(-1, keepdims=True))
    nll = -np.take_along_axis(logp, target_classes[..., None], -1)[..., 0]
    w = ew[target_classes]
    loss_ce = (w * nll).sum() / w.sum()
    mlog = np.concatenate(mlog); mtgt = np.concatenate(mtgt)
    class_error = 100.0 - 100.0 * (mlog.argmax(-1) == mtgt).mean()
    tgt_len = np.array([len(t["labels"]) for t in targets], np.float64)
    card_pred = (logits.argmax(-1) != C1 - 1).sum(1)
    card_err = np.abs(card_pred - tgt_len).mean()
    num_boxes = max(float(tgt_len.sum()), 1.0)
    src = np.concatenate(src_l); tgt = np.concatenate(tgt_l)
    loss_bbox = np.abs(src - tgt).sum() / num_boxes
    def xyxy(b):
        cx, cy, ww, hh = b[:, 0], b[:, 1], b[:, 2], b[:, 3]
        return np.stack([cx - 0.5 * ww, cy - 0.5 * hh, cx + 0.5 * ww, cy + 0.5 * hh], -1)
    s, t = xyxy(src), xyxy(tgt)
    area_s = (s[:, 2] - s[:, 0]) * (s[:, 3] - s[:, 1])
    area_t = (t[:, 2] - t[:, 0]) * (t[:, 3] - t[:, 1])
    iw = np.clip(np.minimum(s[:, 2], t[:, 2]) - np.maximum(s[:, 0], t[:, 0]), 0, None)
    ih = np.clip(np.minimum(s[:, 3], t[:, 3]) - np.maximum(s[:, 1], t[:, 1]), 0, None)
    inter = iw * ih
    union = area_s + area_t - inter
    iou = inter / union
    cw = np.clip(np.maximum(s[:, 2], t[:, 2]) - np.minimum(s[:, 0], t[:, 0]), 0, None)
    ch = np.clip(np.maximum(s[:, 3], t[:, 3]) - np.minimum(s[:, 1], t[:, 1]), 0, None)
    ac = cw * ch
    giou = iou - (ac - union) / ac
    loss_giou = (1.0 - giou).sum() / num_boxes
    return {"loss_ce": loss_ce, "class_error": class_error, "cardinality_error": card_err,
            "loss_bbox": loss_bbox, "loss_giou": loss_giou}


if __name__ == "__main__":
    key = jax.random.PRNGKey(0)
    B, Q, num_classes = 2, 8, 4
    C1 = num_classes + 1
    eos_coef = 0.1

    k1, k2, k3 = jax.random.split(key, 3)
    pred_logits = jax.random.normal(k1, (B, Q, C1), jnp.float32)
    pred_boxes = jax.nn.sigmoid(jax.random.normal(k2, (B, Q, 4), jnp.float32))

    def rand_boxes(k, n):
        kc, ks = jax.random.split(k)
        ctr = jax.random.uniform(kc, (n, 2), minval=0.25, maxval=0.75)
        wh = jax.random.uniform(ks, (n, 2), minval=0.10, maxval=0.40)
        return np.asarray(jnp.concatenate([ctr, wh], -1), np.float32)

    kb0, kb1 = jax.random.split(k3)
    targets = [
        {"labels": np.array([1, 0, 3], np.int32), "boxes": rand_boxes(kb0, 3)},
        {"labels": np.array([2, 2], np.int32),    "boxes": rand_boxes(kb1, 2)},
    ]
    # precomputed matching indices (stand-in for the Hungarian matcher output)
    indices = [(np.array([1, 4, 6], np.int32), np.array([0, 1, 2], np.int32)),
               (np.array([0, 5], np.int32),    np.array([1, 0], np.int32))]

    losses = detr_set_criterion(pred_logits, pred_boxes, targets, indices,
                                num_classes=num_classes, eos_coef=eos_coef)
    jax.block_until_ready(losses)

    ref = reference_losses(pred_logits, pred_boxes, targets, indices, num_classes, eos_coef)
    for name in losses:
        np.testing.assert_allclose(np.asarray(losses[name], np.float64), ref[name],
                                   rtol=1e-3, atol=1e-3)
    print("KERNEL_OK")
</pallas_src>

<mosaic_0001>
module attributes {stable_mosaic.version = 11 : i64} {
  func.func @kernel(%arg0: i32, %arg1: memref<1x8x5xf32, #tpu.memory_space<vmem>>, %arg2: memref<1x8x1xi32, #tpu.memory_space<vmem>>, %arg3: memref<16x128xf32, #tpu.memory_space<vmem>>, %arg4: memref<1x8x128xf32, #tpu.memory_space<vmem>>) attributes {dimension_semantics = [#tpu.dimension_semantics<parallel>], iteration_bounds = array<i64: 2>, scalar_prefetch = 0 : i64, scratch_operands = 0 : i64, tpu.core_type = #tpu.core_type<tc>, window_params = [{transform_indices = @transform_0, window_bounds = array<i64: 1, 8, 5>}, {transform_indices = @transform_1, window_bounds = array<i64: 1, 8, 1>}, {pipeline_mode = #tpu.pipeline_mode<synchronous>, transform_indices = @transform_2, window_bounds = array<i64: 16, 128>}, {transform_indices = @transform_3, window_bounds = array<i64: 1, 8, 128>}]} {
    %c0 = arith.constant 0 : index
    %c0_0 = arith.constant 0 : index
    %c0_1 = arith.constant 0 : index
    %0 = vector.load %arg1[%c0, %c0_0, %c0_1] : memref<1x8x5xf32, #tpu.memory_space<vmem>>, vector<1x8x5xf32>
    %1 = vector.shape_cast %0 : vector<1x8x5xf32> to vector<8x5xf32>
    %c0_2 = arith.constant 0 : index
    %c0_3 = arith.constant 0 : index
    %c0_4 = arith.constant 0 : index
    %2 = vector.load %arg2[%c0_2, %c0_3, %c0_4] : memref<1x8x1xi32, #tpu.memory_space<vmem>>, vector<1x8x1xi32>
    %3 = vector.shape_cast %2 : vector<1x8x1xi32> to vector<8x1xi32>
    %4 = tpu.iota {dimensions = array<i32: 1>} : vector<8x5xi32>
    %5 = vector.broadcast %3 : vector<8x1xi32> to vector<8x5xi32>
    %6 = arith.cmpi eq, %4, %5 : vector<8x5xi32>
    %cst = arith.constant dense<0xFF800000> : vector<8xf32>
    %7 = vector.multi_reduction <maximumf>, %1, %cst [1] : vector<8x5xf32> to vector<8xf32>
    %8 = vector.shape_cast %7 : vector<8xf32> to vector<8x1xf32>
    %9 = vector.broadcast %8 : vector<8x1xf32> to vector<8x5xf32>
    %10 = arith.subf %1, %9 : vector<8x5xf32>
    %11 = math.exp %10 : vector<8x5xf32>
    %cst_5 = arith.constant dense<0.000000e+00> : vector<8xf32>
    %12 = vector.multi_reduction <add>, %11, %cst_5 [1] : vector<8x5xf32> to vector<8xf32>
    %13 = vector.shape_cast %12 : vector<8xf32> to vector<8x1xf32>
    %14 = math.log %13 : vector<8x1xf32>
    %cst_6 = arith.constant 0.000000e+00 : f32
    %15 = vector.broadcast %cst_6 : f32 to vector<8x5xf32>
    %16 = arith.select %6, %10, %15 : vector<8x5xi1>, vector<8x5xf32>
    %cst_7 = arith.constant dense<0.000000e+00> : vector<8xf32>
    %17 = vector.multi_reduction <add>, %16, %cst_7 [1] : vector<8x5xf32> to vector<8xf32>
    %18 = vector.shape_cast %17 : vector<8xf32> to vector<8x1xf32>
    %19 = arith.subf %14, %18 : vector<8x1xf32>
    %c4_i32 = arith.constant 4 : i32
    %20 = vector.broadcast %c4_i32 : i32 to vector<8x1xi32>
    %21 = arith.cmpi eq, %3, %20 : vector<8x1xi32>
    %cst_8 = arith.constant 1.000000e-01 : f32
    %cst_9 = arith.constant 1.000000e+00 : f32
    %22 = vector.broadcast %cst_8 : f32 to vector<8x1xf32>
    %23 = vector.broadcast %cst_9 : f32 to vector<8x1xf32>
    %24 = arith.select %21, %22, %23 : vector<8x1xi1>, vector<8x1xf32>
    %cst_10 = arith.constant 0.000000e+00 : f32
    %cst_11 = arith.constant 1.000000e+00 : f32
    %25 = vector.broadcast %cst_10 : f32 to vector<8x1xf32>
    %26 = vector.broadcast %cst_11 : f32 to vector<8x1xf32>
    %27 = arith.select %21, %25, %26 : vector<8x1xi1>, vector<8x1xf32>
    %28 = arith.mulf %24, %19 : vector<8x1xf32>
    %29 = vector.shape_cast %28 : vector<8x1xf32> to vector<1x8x1xf32>
    %cst_12 = arith.constant dense<0.000000e+00> : vector<1xf32>
    %30 = vector.multi_reduction <add>, %29, %cst_12 [1, 2] : vector<1x8x1xf32> to vector<1xf32>
    %31 = vector.shape_cast %30 : vector<1xf32> to vector<1x1x1xf32>
    %32 = vector.extract %31[0, 0, 0] : f32 from vector<1x1x1xf32>
    %33 = vector.shape_cast %24 : vector<8x1xf32> to vector<1x8x1xf32>
    %cst_13 = arith.constant dense<0.000000e+00> : vector<1xf32>
    %34 = vector.multi_reduction <add>, %33, %cst_13 [1, 2] : vector<1x8x1xf32> to vector<1xf32>
    %35 = vector.shape_cast %34 : vector<1xf32> to vector<1x1x1xf32>
    %36 = vector.extract %35[0, 0, 0] : f32 from vector<1x1x1xf32>
    %cst_14 = arith.constant 0.000000e+00 : f32
    %37 = vector.broadcast %cst_14 : f32 to vector<8x1xf32>
    %38 = arith.cmpf oge, %18, %37 : vector<8x1xf32>
    %cst_15 = arith.constant 1.000000e+00 : f32
    %cst_16 = arith.constant 0.000000e+00 : f32
    %39 = vector.broadcast %cst_15 : f32 to vector<8x1xf32>
    %40 = vector.broadcast %cst_16 : f32 to vector<8x1xf32>
    %41 = arith.select %38, %39, %40 : vector<8x1xi1>, vector<8x1xf32>
    %42 = arith.mulf %41, %27 : vector<8x1xf32>
    %43 = vector.shape_cast %42 : vector<8x1xf32> to vector<1x8x1xf32>
    %cst_17 = arith.constant dense<0.000000e+00> : vector<1xf32>
    %44 = vector.multi_reduction <add>, %43, %cst_17 [1, 2] : vector<1x8x1xf32> to vector<1xf32>
    %45 = vector.shape_cast %44 : vector<1xf32> to vector<1x1x1xf32>
    %46 = vector.extract %45[0, 0, 0] : f32 from vector<1x1x1xf32>
    %47 = vector.shape_cast %27 : vector<8x1xf32> to vector<1x8x1xf32>
    %cst_18 = arith.constant dense<0.000000e+00> : vector<1xf32>
    %48 = vector.multi_reduction <add>, %47, %cst_18 [1, 2] : vector<1x8x1xf32> to vector<1xf32>
    %49 = vector.shape_cast %48 : vector<1xf32> to vector<1x1x1xf32>
    %50 = vector.extract %49[0, 0, 0] : f32 from vector<1x1x1xf32>
    %c4_i32_19 = arith.constant 4 : i32
    %51 = vector.broadcast %c4_i32_19 : i32 to vector<8x5xi32>
    %52 = arith.cmpi eq, %4, %51 : vector<8x5xi32>
    %cst_20 = arith.constant -1.000000e+30 : f32
    %53 = vector.broadcast %cst_20 : f32 to vector<8x5xf32>
    %54 = arith.select %52, %1, %53 : vector<8x5xi1>, vector<8x5xf32>
    %cst_21 = arith.constant dense<0xFF800000> : vector<8xf32>
    %55 = vector.multi_reduction <maximumf>, %54, %cst_21 [1] : vector<8x5xf32> to vector<8xf32>
    %56 = vector.shape_cast %55 : vector<8xf32> to vector<8x1xf32>
    %cst_22 = arith.constant -1.000000e+30 : f32
    %57 = vector.broadcast %cst_22 : f32 to vector<8x5xf32>
    %58 = arith.select %52, %57, %1 : vector<8x5xi1>, vector<8x5xf32>
    %cst_23 = arith.constant dense<0xFF800000> : vector<8xf32>
    %59 = vector.multi_reduction <maximumf>, %58, %cst_23 [1] : vector<8x5xf32> to vector<8xf32>
    %60 = vector.shape_cast %59 : vector<8xf32> to vector<8x1xf32>
    %61 = arith.cmpf oge, %60, %56 : vector<8x1xf32>
    %cst_24 = arith.constant 1.000000e+00 : f32
    %cst_25 = arith.constant 0.000000e+00 : f32
    %62 = vector.broadcast %cst_24 : f32 to vector<8x1xf32>
    %63 = vector.broadcast %cst_25 : f32 to vector<8x1xf32>
    %64 = arith.select %61, %62, %63 : vector<8x1xi1>, vector<8x1xf32>
    %65 = vector.shape_cast %64 : vector<8x1xf32> to vector<1x8x1xf32>
    %cst_26 = arith.constant dense<0.000000e+00> : vector<1xf32>
    %66 = vector.multi_reduction <add>, %65, %cst_26 [1, 2] : vector<1x8x1xf32> to vector<1xf32>
    %67 = vector.shape_cast %66 : vector<1xf32> to vector<1x1x1xf32>
    %68 = vector.extract %67[0, 0, 0] : f32 from vector<1x1x1xf32>
    %69 = tpu.iota {dimensions = array<i32: 1>} : vector<1x8x128xi32>
    %c0_i32 = arith.constant 0 : i32
    %70 = vector.broadcast %c0_i32 : i32 to vector<1x8x128xi32>
    %71 = arith.cmpi eq, %69, %70 : vector<1x8x128xi32>
    %cst_27 = arith.constant 0.000000e+00 : f32
    %72 = vector.broadcast %32 : f32 to vector<1x8x128xf32>
    %73 = vector.broadcast %cst_27 : f32 to vector<1x8x128xf32>
    %74 = arith.select %71, %72, %73 : vector<1x8x128xi1>, vector<1x8x128xf32>
    %c1_i32 = arith.constant 1 : i32
    %75 = vector.broadcast %c1_i32 : i32 to vector<1x8x128xi32>
    %76 = arith.cmpi eq, %69, %75 : vector<1x8x128xi32>
    %cst_28 = arith.constant 0.000000e+00 : f32
    %77 = vector.broadcast %36 : f32 to vector<1x8x128xf32>
    %78 = vector.broadcast %cst_28 : f32 to vector<1x8x128xf32>
    %79 = arith.select %76, %77, %78 : vector<1x8x128xi1>, vector<1x8x128xf32>
    %80 = arith.addf %74, %79 : vector<1x8x128xf32>
    %c2_i32 = arith.constant 2 : i32
    %81 = vector.broadcast %c2_i32 : i32 to vector<1x8x128xi32>
    %82 = arith.cmpi eq, %69, %81 : vector<1x8x128xi32>
    %cst_29 = arith.constant 0.000000e+00 : f32
    %83 = vector.broadcast %46 : f32 to vector<1x8x128xf32>
    %84 = vector.broadcast %cst_29 : f32 to vector<1x8x128xf32>
    %85 = arith.select %82, %83, %84 : vector<1x8x128xi1>, vector<1x8x128xf32>
    %86 = arith.addf %80, %85 : vector<1x8x128xf32>
    %c3_i32 = arith.constant 3 : i32
    %87 = vector.broadcast %c3_i32 : i32 to vector<1x8x128xi32>
    %88 = arith.cmpi eq, %69, %87 : vector<1x8x128xi32>
    %cst_30 = arith.constant 0.000000e+00 : f32
    %89 = vector.broadcast %50 : f32 to vector<1x8x128xf32>
    %90 = vector.broadcast %cst_30 : f32 to vector<1x8x128xf32>
    %91 = arith.select %88, %89, %90 : vector<1x8x128xi1>, vector<1x8x128xf32>
    %92 = arith.addf %86, %91 : vector<1x8x128xf32>
    %c4_i32_31 = arith.constant 4 : i32
    %93 = vector.broadcast %c4_i32_31 : i32 to vector<1x8x128xi32>
    %94 = arith.cmpi eq, %69, %93 : vector<1x8x128xi32>
    %cst_32 = arith.constant 0.000000e+00 : f32
    %95 = vector.broadcast %68 : f32 to vector<1x8x128xf32>
    %96 = vector.broadcast %cst_32 : f32 to vector<1x8x128xf32>
    %97 = arith.select %94, %95, %96 : vector<1x8x128xi1>, vector<1x8x128xf32>
    %98 = arith.addf %92, %97 : vector<1x8x128xf32>
    %c0_33 = arith.constant 0 : index
    %c0_34 = arith.constant 0 : index
    %c0_35 = arith.constant 0 : index
    %99 = vector.load %arg4[%c0_33, %c0_34, %c0_35] : memref<1x8x128xf32, #tpu.memory_space<vmem>>, vector<1x8x128xf32>
    tpu.vector_store %arg4[%c0_33, %c0_34, %c0_35], %98 {strides = array<i32>} : memref<1x8x128xf32, #tpu.memory_space<vmem>>, vector<1x8x128xf32>,
    %c0_i32_36 = arith.constant 0 : i32
    %100 = arith.cmpi eq, %arg0, %c0_i32_36 : i32
    %101 = arith.extui %100 : i1 to i32
    %c0_i32_37 = arith.constant 0 : i32
    %102 = arith.cmpi ne, %101, %c0_i32_37 : i32
    scf.if %102 {
      %c0_38 = arith.constant 0 : index
      %c0_39 = arith.constant 0 : index
      %103 = vector.load %arg3[%c0_38, %c0_39] : memref<16x128xf32, #tpu.memory_space<vmem>>, vector<16x128xf32>
      %104 = vector.extract_strided_slice %103 {offsets = [0, 0], sizes = [1, 128], strides = [1, 1]} : vector<16x128xf32> to vector<1x128xf32>
      %105 = vector.extract_strided_slice %103 {offsets = [1, 0], sizes = [1, 128], strides = [1, 1]} : vector<16x128xf32> to vector<1x128xf32>
      %106 = vector.extract_strided_slice %103 {offsets = [2, 0], sizes = [1, 128], strides = [1, 1]} : vector<16x128xf32> to vector<1x128xf32>
      %107 = vector.extract_strided_slice %103 {offsets = [3, 0], sizes = [1, 128], strides = [1, 1]} : vector<16x128xf32> to vector<1x128xf32>
      %108 = vector.extract_strided_slice %103 {offsets = [4, 0], sizes = [1, 128], strides = [1, 1]} : vector<16x128xf32> to vector<1x128xf32>
      %109 = vector.extract_strided_slice %103 {offsets = [5, 0], sizes = [1, 128], strides = [1, 1]} : vector<16x128xf32> to vector<1x128xf32>
      %110 = vector.extract_strided_slice %103 {offsets = [6, 0], sizes = [1, 128], strides = [1, 1]} : vector<16x128xf32> to vector<1x128xf32>
      %111 = vector.extract_strided_slice %103 {offsets = [7, 0], sizes = [1, 128], strides = [1, 1]} : vector<16x128xf32> to vector<1x128xf32>
      %112 = vector.extract_strided_slice %103 {offsets = [8, 0], sizes = [1, 128], strides = [1, 1]} : vector<16x128xf32> to vector<1x128xf32>
      %113 = arith.subf %104, %108 : vector<1x128xf32>
      %114 = math.absf %113 : vector<1x128xf32>
      %115 = arith.subf %105, %109 : vector<1x128xf32>
      %116 = math.absf %115 : vector<1x128xf32>
      %117 = arith.addf %114, %116 : vector<1x128xf32>
      %118 = arith.subf %106, %110 : vector<1x128xf32>
      %119 = math.absf %118 : vector<1x128xf32>
      %120 = arith.addf %117, %119 : vector<1x128xf32>
      %121 = arith.subf %107, %111 : vector<1x128xf32>
      %122 = math.absf %121 : vector<1x128xf32>
      %123 = arith.addf %120, %122 : vector<1x128xf32>
      %124 = arith.mulf %123, %112 : vector<1x128xf32>
      %125 = vector.shape_cast %124 : vector<1x128xf32> to vector<1x1x128xf32>
      %cst_40 = arith.constant dense<0.000000e+00> : vector<1xf32>
      %126 = vector.multi_reduction <add>, %125, %cst_40 [1, 2] : vector<1x1x128xf32> to vector<1xf32>
      %127 = vector.shape_cast %126 : vector<1xf32> to vector<1x1x1xf32>
      %128 = vector.extract %127[0, 0, 0] : f32 from vector<1x1x1xf32>
      %cst_41 = arith.constant 5.000000e-01 : f32
      %129 = vector.broadcast %cst_41 : f32 to vector<1x128xf32>
      %130 = arith.mulf %129, %106 : vector<1x128xf32>
      %131 = arith.subf %104, %130 : vector<1x128xf32>
      %cst_42 = arith.constant 5.000000e-01 : f32
      %132 = vector.broadcast %cst_42 : f32 to vector<1x128xf32>
      %133 = arith.mulf %132, %106 : vector<1x128xf32>
      %134 = arith.addf %104, %133 : vector<1x128xf32>
      %cst_43 = arith.constant 5.000000e-01 : f32
      %135 = vector.broadcast %cst_43 : f32 to vector<1x128xf32>
      %136 = arith.mulf %135, %107 : vector<1x128xf32>
      %137 = arith.subf %105, %136 : vector<1x128xf32>
      %cst_44 = arith.constant 5.000000e-01 : f32
      %138 = vector.broadcast %cst_44 : f32 to vector<1x128xf32>
      %139 = arith.mulf %138, %107 : vector<1x128xf32>
      %140 = arith.addf %105, %139 : vector<1x128xf32>
      %cst_45 = arith.constant 5.000000e-01 : f32
      %141 = vector.broadcast %cst_45 : f32 to vector<1x128xf32>
      %142 = arith.mulf %141, %110 : vector<1x128xf32>
      %143 = arith.subf %108, %142 : vector<1x128xf32>
      %cst_46 = arith.constant 5.000000e-01 : f32
      %144 = vector.broadcast %cst_46 : f32 to vector<1x128xf32>
      %145 = arith.mulf %144, %110 : vector<1x128xf32>
      %146 = arith.addf %108, %145 : vector<1x128xf32>
      %cst_47 = arith.constant 5.000000e-01 : f32
      %147 = vector.broadcast %cst_47 : f32 to vector<1x128xf32>
      %148 = arith.mulf %147, %111 : vector<1x128xf32>
      %149 = arith.subf %109, %148 : vector<1x128xf32>
      %cst_48 = arith.constant 5.000000e-01 : f32
      %150 = vector.broadcast %cst_48 : f32 to vector<1x128xf32>
      %151 = arith.mulf %150, %111 : vector<1x128xf32>
      %152 = arith.addf %109, %151 : vector<1x128xf32>
      %153 = arith.subf %134, %131 : vector<1x128xf32>
      %154 = arith.subf %140, %137 : vector<1x128xf32>
      %155 = arith.mulf %153, %154 : vector<1x128xf32>
      %156 = arith.subf %146, %143 : vector<1x128xf32>
      %157 = arith.subf %152, %149 : vector<1x128xf32>
      %158 = arith.mulf %156, %157 : vector<1x128xf32>
      %159 = arith.minimumf %134, %146 : vector<1x128xf32>
      %160 = arith.maximumf %131, %143 : vector<1x128xf32>
      %161 = arith.subf %159, %160 : vector<1x128xf32>
      %cst_49 = arith.constant 0.000000e+00 : f32
      %162 = vector.broadcast %cst_49 : f32 to vector<1x128xf32>
      %163 = arith.maximumf %161, %162 : vector<1x128xf32>
      %164 = arith.minimumf %140, %152 : vector<1x128xf32>
      %165 = arith.maximumf %137, %149 : vector<1x128xf32>
      %166 = arith.subf %164, %165 : vector<1x128xf32>
      %cst_50 = arith.constant 0.000000e+00 : f32
      %167 = vector.broadcast %cst_50 : f32 to vector<1x128xf32>
      %168 = arith.maximumf %166, %167 : vector<1x128xf32>
      %169 = arith.mulf %163, %168 : vector<1x128xf32>
      %170 = arith.addf %155, %158 : vector<1x128xf32>
      %171 = arith.subf %170, %169 : vector<1x128xf32>
      %cst_51 = arith.constant 1.000000e-07 : f32
      %172 = vector.broadcast %cst_51 : f32 to vector<1x128xf32>
      %173 = arith.addf %171, %172 : vector<1x128xf32>
      %174 = arith.divf %169, %173 : vector<1x128xf32>
      %175 = arith.maximumf %134, %146 : vector<1x128xf32>
      %176 = arith.minimumf %131, %143 : vector<1x128xf32>
      %177 = arith.subf %175, %176 : vector<1x128xf32>
      %cst_52 = arith.constant 0.000000e+00 : f32
      %178 = vector.broadcast %cst_52 : f32 to vector<1x128xf32>
      %179 = arith.maximumf %177, %178 : vector<1x128xf32>
      %180 = arith.maximumf %140, %152 : vector<1x128xf32>
      %181 = arith.minimumf %137, %149 : vector<1x128xf32>
      %182 = arith.subf %180, %181 : vector<1x128xf32>
      %cst_53 = arith.constant 0.000000e+00 : f32
      %183 = vector.broadcast %cst_53 : f32 to vector<1x128xf32>
      %184 = arith.maximumf %182, %183 : vector<1x128xf32>
      %185 = arith.mulf %179, %184 : vector<1x128xf32>
      %186 = arith.subf %185, %171 : vector<1x128xf32>
      %cst_54 = arith.constant 1.000000e-07 : f32
      %187 = vector.broadcast %cst_54 : f32 to vector<1x128xf32>
      %188 = arith.addf %185, %187 : vector<1x128xf32>
      %189 = arith.divf %186, %188 : vector<1x128xf32>
      %190 = arith.subf %174, %189 : vector<1x128xf32>
      %cst_55 = arith.constant 1.000000e+00 : f32
      %191 = vector.broadcast %cst_55 : f32 to vector<1x128xf32>
      %192 = arith.subf %191, %190 : vector<1x128xf32>
      %193 = arith.mulf %192, %112 : vector<1x128xf32>
      %194 = vector.shape_cast %193 : vector<1x128xf32> to vector<1x1x128xf32>
      %cst_56 = arith.constant dense<0.000000e+00> : vector<1xf32>
      %195 = vector.multi_reduction <add>, %194, %cst_56 [1, 2] : vector<1x1x128xf32> to vector<1xf32>
      %196 = vector.shape_cast %195 : vector<1xf32> to vector<1x1x1xf32>
      %197 = vector.extract %196[0, 0, 0] : f32 from vector<1x1x1xf32>
      %c0_57 = arith.constant 0 : index
      %c0_58 = arith.constant 0 : index
      %c0_59 = arith.constant 0 : index
      %198 = vector.load %arg4[%c0_57, %c0_58, %c0_59] : memref<1x8x128xf32, #tpu.memory_space<vmem>>, vector<1x8x128xf32>
      %c5_i32 = arith.constant 5 : i32
      %199 = vector.broadcast %c5_i32 : i32 to vector<1x8x128xi32>
      %200 = arith.cmpi eq, %69, %199 : vector<1x8x128xi32>
      %cst_60 = arith.constant 0.000000e+00 : f32
      %201 = vector.broadcast %128 : f32 to vector<1x8x128xf32>
      %202 = vector.broadcast %cst_60 : f32 to vector<1x8x128xf32>
      %203 = arith.select %200, %201, %202 : vector<1x8x128xi1>, vector<1x8x128xf32>
      %c6_i32 = arith.constant 6 : i32
      %204 = vector.broadcast %c6_i32 : i32 to vector<1x8x128xi32>
      %205 = arith.cmpi eq, %69, %204 : vector<1x8x128xi32>
      %cst_61 = arith.constant 0.000000e+00 : f32
      %206 = vector.broadcast %197 : f32 to vector<1x8x128xf32>
      %207 = vector.broadcast %cst_61 : f32 to vector<1x8x128xf32>
      %208 = arith.select %205, %206, %207 : vector<1x8x128xi1>, vector<1x8x128xf32>
      %209 = arith.addf %203, %208 : vector<1x8x128xf32>
      %210 = arith.addf %198, %209 : vector<1x8x128xf32>
      %c0_62 = arith.constant 0 : index
      %c0_63 = arith.constant 0 : index
      %c0_64 = arith.constant 0 : index
      %211 = vector.load %arg4[%c0_62, %c0_63, %c0_64] : memref<1x8x128xf32, #tpu.memory_space<vmem>>, vector<1x8x128xf32>
      tpu.vector_store %arg4[%c0_62, %c0_63, %c0_64], %210 {strides = array<i32>} : memref<1x8x128xf32, #tpu.memory_space<vmem>>, vector<1x8x128xf32>,
    } else {
    }
    return
  }
  func.func @transform_0(%arg0: i32) -> (i32, i32, i32) {
    %c0_i32 = arith.constant 0 : i32
    %c0_i32_0 = arith.constant 0 : i32
    %c0_i32_1 = arith.constant 0 : i32
    return %arg0, %c0_i32, %c0_i32_0 : i32, i32, i32
  }
  func.func @transform_1(%arg0: i32) -> (i32, i32, i32) {
    %c0_i32 = arith.constant 0 : i32
    %c0_i32_0 = arith.constant 0 : i32
    %c0_i32_1 = arith.constant 0 : i32
    return %arg0, %c0_i32, %c0_i32_0 : i32, i32, i32
  }
  func.func @transform_2(%arg0: i32) -> (i32, i32) {
    %c0_i32 = arith.constant 0 : i32
    %c0_i32_0 = arith.constant 0 : i32
    %c0_i32_1 = arith.constant 0 : i32
    return %c0_i32, %c0_i32_0 : i32, i32
  }
  func.func @transform_3(%arg0: i32) -> (i32, i32, i32) {
    %c0_i32 = arith.constant 0 : i32
    %c0_i32_0 = arith.constant 0 : i32
    %c0_i32_1 = arith.constant 0 : i32
    return %arg0, %c0_i32, %c0_i32_0 : i32, i32, i32
  }
}

</mosaic_0001>

<llo_original>
// kernel: _detr_losses_jit.1
$region0: #{_detr_losses_jit.1}
  #allocation0 [shape = 'u32[]', space=smem, size = 0x4, offset = 0x4, fixed_abs, tag = 'smem constant byte address 0x4 - core index']
  #allocation1 [shape = 'u32[144,128]{1,0:T(1,128)}', space=vmem, size = 0x12000, scoped, tag = 'internal scratch']
  %s0 = inlined_call_operand.vmem [shape: f32[2,8,5], index: 0, kind: input, shape index: {}]
  %s1 = inlined_call_operand.vmem [shape: s32[2,8,1], index: 1, kind: input, shape index: {}]
  %s2 = inlined_call_operand.vmem [shape: f32[16,128], index: 2, kind: input, shape index: {}]
  %s3 = inlined_call_operand.vmem [shape: f32[2,8,128], index: 3, kind: output, shape index: {}]
  %s4 = sld [smem:[#allocation0]]
  $region49: #{_detr_losses_jit.1} parent=0
    _
  %s6 = ssub.s32 1, %s4
  %s7 = scalar_select 0, %s6, %s4
  loop: start=0, step=1, limit=4
  $region2: #{_detr_losses_jit.1} parent=0 // loop_pre_header
    _
  $region3: #{_detr_losses_jit.1} parent=0 // loop_header
    %s9 = sphi 0, %s13
    %p10 = scmp.ge.s32.totalorder %s9, 4
    %s19 = sphi 0, %s21
    %s22 = sphi 0, %s19
    %s23 = sphi 0, %s22
    %s39 = sphi 0, %s23
    %s45 = sphi 0, %s47
    %s48 = sphi 0, %s45
    %s49 = sphi 0, %s48
    %s65 = sphi 0, %s49
    %s69 = sphi 0, %s69
    %s71 = sphi 0, %s69
    %s72 = sphi 0, %s71
    %s86 = sphi 0, %s72
    %s92 = sphi 0, %s94
    %s95 = sphi 0, %s92
    %s96 = sphi 0, %s95
    %s112 = sphi 0, %s96
  $region4: #{_detr_losses_jit.1} parent=0 // loop_header_branch
    %12 = sbr.rel (%p10) target = $region8
  $region5: #{_detr_losses_jit.1} parent=0 // loop_body
    %s14 = ssub.s32 %s9, 1
    %s15 = ssub.s32 %s9, 2
    %s16 = sadd.s32 %s9, 1
    %s17 = ssub.s32 %s9, %s16
    %p18 = scmp.eq.s32.totalorder %s17, 0
    %s20 = sadd.s32 %s19, 1
    %s21 = scalar_select %p18, %s19, %s20
    %p24 = pneg %p18
    %p25 = scmp.eq.s32.totalorder %s9, 1
    %p26 = por %p24, %p25
    %p27 = scmp.ne.s32.totalorder %s19, %s22
    %p28 = scmp.eq.s32.totalorder %s9, 0
    %p29 = por %p27, %p28
    %p30 = scmp.ne.s32.totalorder %s19, %s22
    %p31 = scmp.eq.s32.totalorder %s14, 1
    %p32 = por %p30, %p31
    %p33 = scmp.ne.s32.totalorder %s22, %s23
    %p34 = scmp.eq.s32.totalorder %s14, 0
    %p35 = por %p33, %p34
    %p36 = scmp.ne.s32.totalorder %s22, %s23
    %p37 = scmp.eq.s32.totalorder %s15, 1
    %p38 = por %p36, %p37
    %p40 = scmp.ne.s32.totalorder %s23, %s39
    %p41 = scmp.eq.s32.totalorder %s15, 0
    %p42 = por %p40, %p41
    %s43 = ssub.s32 %s9, %s16
    %p44 = scmp.eq.s32.totalorder %s43, 0
    %s46 = sadd.s32 %s45, 1
    %s47 = scalar_select %p44, %s45, %s46
    %p50 = pneg %p44
    %p51 = scmp.eq.s32.totalorder %s9, 1
    %p52 = por %p50, %p51
    %p53 = scmp.ne.s32.totalorder %s45, %s48
    %p54 = scmp.eq.s32.totalorder %s9, 0
    %p55 = por %p53, %p54
    %p56 = scmp.ne.s32.totalorder %s45, %s48
    %p57 = scmp.eq.s32.totalorder %s14, 1
    %p58 = por %p56, %p57
    %p59 = scmp.ne.s32.totalorder %s48, %s49
    %p60 = scmp.eq.s32.totalorder %s14, 0
    %p61 = por %p59, %p60
    %p62 = scmp.ne.s32.totalorder %s48, %s49
    %p63 = scmp.eq.s32.totalorder %s15, 1
    %p64 = por %p62, %p63
    %p66 = scmp.ne.s32.totalorder %s49, %s65
    %p67 = scmp.eq.s32.totalorder %s15, 0
    %p68 = por %p66, %p67
    %s70 = sadd.s32 %s69, 1
    %p73 = scmp.eq.s32.totalorder %s9, 1
    %p74 = scmp.ne.s32.totalorder %s69, %s71
    %p75 = scmp.eq.s32.totalorder %s9, 0
    %p76 = por %p74, %p75
    %p77 = scmp.ne.s32.totalorder %s69, %s71
    %p78 = scmp.eq.s32.totalorder %s14, 1
    %p79 = por %p77, %p78
    %p80 = scmp.ne.s32.totalorder %s71, %s72
    %p81 = scmp.eq.s32.totalorder %s14, 0
    %p82 = por %p80, %p81
    %p83 = scmp.ne.s32.totalorder %s71, %s72
    %p84 = scmp.eq.s32.totalorder %s15, 1
    %p85 = por %p83, %p84
    %p87 = scmp.ne.s32.totalorder %s72, %s86
    %p88 = scmp.eq.s32.totalorder %s15, 0
    %p89 = por %p87, %p88
    %s90 = ssub.s32 %s9, %s16
    %p91 = scmp.eq.s32.totalorder %s90, 0
    %s93 = sadd.s32 %s92, 1
    %s94 = scalar_select %p91, %s92, %s93
    %p97 = pneg %p91
    %p98 = scmp.eq.s32.totalorder %s9, 1
    %p99 = por %p97, %p98
    %p100 = scmp.ne.s32.totalorder %s92, %s95
    %p101 = scmp.eq.s32.totalorder %s9, 0
    %p102 = por %p100, %p101
    %p103 = scmp.ne.s32.totalorder %s92, %s95
    %p104 = scmp.eq.s32.totalorder %s14, 1
    %p105 = por %p103, %p104
    %p106 = scmp.ne.s32.totalorder %s95, %s96
    %p107 = scmp.eq.s32.totalorder %s14, 0
    %p108 = por %p106, %p107
    %p109 = scmp.ne.s32.totalorder %s95, %s96
    %p110 = scmp.eq.s32.totalorder %s15, 1
    %p111 = por %p109, %p110
    %p113 = scmp.ne.s32.totalorder %s96, %s112
    %p114 = scmp.eq.s32.totalorder %s15, 0
    %p115 = por %p113, %p114
    %p116 = scmp.le.s32.totalorder 1, %s9
    %p117 = scmp.lt.s32.totalorder %s9, 3
    %p118 = pnand %p116, %p117
    %p119 = pneg %p118
    // Predicated region
    $region9: #{_detr_losses_jit.1} parent=5 // pred_check
      _
    $region10: #{_detr_losses_jit.1} parent=5 // pred_check_branch
      %121 = sbr.rel (%p118) target = $region12
    $region11: #{_detr_losses_jit.1} parent=5 // pred_region
      %s122 = ssub.s32 %s9, 1
      // Predicated region
      $region13: #{_detr_losses_jit.1} parent=11 // pred_check
        %p123 = pneg %p82
      $region14: #{_detr_losses_jit.1} parent=11 // pred_check_branch
        %125 = sbr.rel (%p123) target = $region16
      $region15: #{_detr_losses_jit.1} parent=11 // pred_region
        _
      $region16: #{_detr_losses_jit.1} parent=11 // pred_fallthru
        _
    $region12: #{_detr_losses_jit.1} parent=5 // pred_fallthru
      _
    %p126 = scmp.lt.s32.totalorder %s9, 2
    // Predicated region
    $region17: #{_detr_losses_jit.1} parent=5 // pred_check
      %p127 = pneg %p126
    $region18: #{_detr_losses_jit.1} parent=5 // pred_check_branch
      %129 = sbr.rel (%p127) target = $region20
    $region19: #{_detr_losses_jit.1} parent=5 // pred_region
      // Predicated region
      $region21: #{_detr_losses_jit.1} parent=19 // pred_check
        %p130 = pneg %p29
      $region22: #{_detr_losses_jit.1} parent=19 // pred_check_branch
        %132 = sbr.rel (%p130) target = $region24
      $region23: #{_detr_losses_jit.1} parent=19 // pred_region
        %p133 = scmp.lt.s32.totalorder %s9, 1
        %s134 = scalar_select %p133, %s9, 1
        %s135 = smul.addr %s134, 8
        %s136 = scalar_lea.vmem %s0, %s135
      $region24: #{_detr_losses_jit.1} parent=19 // pred_fallthru
        _
      // Predicated region
      $region25: #{_detr_losses_jit.1} parent=19 // pred_check
        %p137 = pneg %p55
      $region26: #{_detr_losses_jit.1} parent=19 // pred_check_branch
        %139 = sbr.rel (%p137) target = $region28
      $region27: #{_detr_losses_jit.1} parent=19 // pred_region
        %p140 = scmp.lt.s32.totalorder %s9, 1
        %s141 = scalar_select %p140, %s9, 1
        %s142 = smul.addr %s141, 8
        %s143 = scalar_lea.vmem %s1, %s142
      $region28: #{_detr_losses_jit.1} parent=19 // pred_fallthru
        _
    $region20: #{_detr_losses_jit.1} parent=5 // pred_fallthru
      _
    %p144 = scmp.le.s32.totalorder 1, %s9
    %p145 = scmp.lt.s32.totalorder %s9, 3
    %p146 = pnand %p144, %p145
    %p147 = pneg %p146
    // Predicated region
    $region29: #{_detr_losses_jit.1} parent=5 // pred_check
      _
    $region30: #{_detr_losses_jit.1} parent=5 // pred_check_branch
      %149 = sbr.rel (%p146) target = $region32
    $region31: #{_detr_losses_jit.1} parent=5 // pred_region
      %s150 = ssub.s32 %s9, 1
      %p151 = scmp.lt.s32.totalorder %s14, 1
      %s152 = scalar_select %p151, %s14, 1
      %s153 = smul.addr %s152, 8
      %s154 = scalar_lea.vmem %s0, %s153
      %p155 = pneg %p35
      %p156 = pneg %p32
      %p157 = scmp.lt.s32.totalorder %s14, 1
      %s158 = scalar_select %p157, %s14, 1
      %s159 = smul.addr %s158, 8
      %s160 = scalar_lea.vmem %s1, %s159
      %p161 = pneg %p61
      %p162 = pneg %p58
      %p163 = pneg %p82
      %p164 = pneg %p79
      %p165 = pneg %p108
      %p166 = pneg %p105
      %p167 = scmp.lt.s32.totalorder %s14, 1
      %s168 = scalar_select %p167, %s14, 1
      %s169 = smul.addr %s168, 8
      %s170 = scalar_lea.vmem %s3, %s169
      %p171 = scmp.lt.s32.totalorder %s14, 1
      %s172 = scalar_select %p171, %s14, 1
      %s173 = smul.addr %s172, 8
      %s174 = scalar_lea.vmem %s0, %s173
      %p175 = scmp.lt.s32.totalorder %s14, 1
      %s176 = scalar_select %p175, %s14, 1
      %s177 = smul.addr %s176, 8
      %s178 = scalar_lea.vmem %s1, %s177
      %p179 = scmp.lt.s32.totalorder %s14, 1
      %s180 = scalar_select %p179, %s14, 1
      %s181 = smul.addr %s180, 8
      %s182 = scalar_lea.vmem %s3, %s181
      %v183 = vld [vmem:[%s174] sm:$0xff]
      %v184 = vld [vmem:[%s178] sm:$0xff]
      %v185 = vlaneseq
      %v186 = vand.u32 %v185, 127
      %187 = vset.pattern.permute.xlu0 0
      %188 = vperm.xlu0 %187, %v184
      %v189 = vpop.permute.xlu0 %188
      %vm190 = vcmp.eq.s32.totalorder %v186, %v189
      %vm191 = vcmask 39936
      %v192 = vsel %vm191, %v183, -inf
      %193 = vmax.xlane.f32.xlu0 %v192
      %v194 = vpop.xlane.xlu0 %193
      %v195 = vsub.f32 %v183, %v194
      %v196 = vmul.f32 %v195, 1.442695
      %v197 = vpow.pop %v196
      %v198 = vsel %vm191, %v197, 0.0
      %199 = vadd.xlane.f32.xlu0 %v198
      %v200 = vpop.xlane.xlu0 %199
      %v201 = vlog2.pop %v200
      %v202 = vmul.f32 %v201, 0.6931472
      %v203 = vsel %vm190, %v195, 0.0
      %v204 = vsel %vm191, %v203, 0.0
      %205 = vadd.xlane.f32.xlu0 %v204
      %v206 = vpop.xlane.xlu0 %205
      %v207 = vsub.f32 %v202, %v206
      %vm208 = vcmp.eq.s32.totalorder %v184, 4
      %v209 = vsel %vm208, 0.1, 1.0
      %v210 = vsel %vm208, 0.0, 1.0
      %v211 = vmul.f32 %v209, %v207
      %vm212 = vcmask 7168
      %v213 = vsel %vm212, %v211, 0.0
      %214 = vadd.xlane.f32.xlu0 %v213
      %v215 = vpop.xlane.xlu0 %214
      %v216 = vrot.slane %v215, 4
      %v217 = vadd.f32 %v215, %v216
      %v218 = vrot.slane %v217, 2
      %v219 = vadd.f32 %v217, %v218
      %v220 = vrot.slane %v219, 1
      %v221 = vadd.f32 %v219, %v220
      %s222 = vtos %v221
      %v223 = vsel %vm212, %v209, 0.0
      %224 = vadd.xlane.f32.xlu0 %v223
      %v225 = vpop.xlane.xlu0 %224
      %v226 = vrot.slane %v225, 4
      %v227 = vadd.f32 %v225, %v226
      %v228 = vrot.slane %v227, 2
      %v229 = vadd.f32 %v227, %v228
      %v230 = vrot.slane %v229, 1
      %v231 = vadd.f32 %v229, %v230
      %s232 = vtos %v231
      %vm233 = vcmp.ge.f32.partialorder %v206, 0.0
      %v234 = vsel %vm233, 1.0, 0.0
      %v235 = vmul.f32 %v234, %v210
      %v236 = vsel %vm212, %v235, 0.0
      %237 = vadd.xlane.f32.xlu0 %v236
      %v238 = vpop.xlane.xlu0 %237
      %v239 = vrot.slane %v238, 4
      %v240 = vadd.f32 %v238, %v239
      %v241 = vrot.slane %v240, 2
      %v242 = vadd.f32 %v240, %v241
      %v243 = vrot.slane %v242, 1
      %v244 = vadd.f32 %v242, %v243
      %s245 = vtos %v244
      %v246 = vsel %vm212, %v210, 0.0
      %247 = vadd.xlane.f32.xlu0 %v246
      %v248 = vpop.xlane.xlu0 %247
      %v249 = vrot.slane %v248, 4
      %v250 = vadd.f32 %v248, %v249
      %v251 = vrot.slane %v250, 2
      %v252 = vadd.f32 %v250, %v251
      %v253 = vrot.slane %v252, 1
      %v254 = vadd.f32 %v252, %v253
      %s255 = vtos %v254
      %vm256 = vcmp.eq.s32.totalorder %v186, 4
      %v257 = vsel %vm256, %v183, -1e+30
      %v258 = vsel %vm191, %v257, -inf
      %259 = vmax.xlane.f32.xlu0 %v258
      %v260 = vpop.xlane.xlu0 %259
      %v261 = vsel %vm256, -1e+30, %v183
      %v262 = vsel %vm191, %v261, -inf
      %263 = vmax.xlane.f32.xlu0 %v262
      %v264 = vpop.xlane.xlu0 %263
      %vm265 = vcmp.ge.f32.partialorder %v264, %v260
      %v266 = vsel %vm265, 1.0, 0.0
      %v267 = vsel %vm212, %v266, 0.0
      %268 = vadd.xlane.f32.xlu0 %v267
      %v269 = vpop.xlane.xlu0 %268
      %v270 = vrot.slane %v269, 4
      %v271 = vadd.f32 %v269, %v270
      %v272 = vrot.slane %v271, 2
      %v273 = vadd.f32 %v271, %v272
      %v274 = vrot.slane %v273, 1
      %v275 = vadd.f32 %v273, %v274
      %s276 = vtos %v275
      %v277 = vlaneseq
      %v278 = vshrl.u32 %v277, 7
      %vm279 = vcmp.eq.s32.totalorder %v278, 0
      %v280 = vstv %s222
      %v281 = vsel %vm279, %v280, 0.0
      %vm282 = vcmp.eq.s32.totalorder %v278, 1
      %v283 = vstv %s232
      %v284 = vsel %vm282, %v283, 0.0
      %v285 = vadd.f32 %v281, %v284
      %vm286 = vcmp.eq.s32.totalorder %v278, 2
      %v287 = vstv %s245
      %v288 = vsel %vm286, %v287, 0.0
      %v289 = vadd.f32 %v285, %v288
      %vm290 = vcmp.eq.s32.totalorder %v278, 3
      %v291 = vstv %s255
      %v292 = vsel %vm290, %v291, 0.0
      %v293 = vadd.f32 %v289, %v292
      %vm294 = vcmp.eq.s32.totalorder %v278, 4
      %v295 = vstv %s276
      %v296 = vsel %vm294, %v295, 0.0
      %v297 = vadd.f32 %v293, %v296
      %298 = vst [vmem:[%s182] sm:$0xff] %v297
      %p299 = scmp.eq.s32.totalorder %s14, 0
      // Predicated region
      $region33: #{_detr_losses_jit.1} parent=31 // pred_check
        %p300 = pneg %p299
      $region34: #{_detr_losses_jit.1} parent=31 // pred_check_branch
        %302 = sbr.rel (%p300) target = $region36
      $region35: #{_detr_losses_jit.1} parent=31 // pred_region
        %v303 = vld [vmem:[%s2] sm:$0xff]
        %v304 = vld [vmem:[%s2 + $0x8] sm:$0xff]
        %v306 = vrot.slane %v303, 4
        %v308 = vsub.f32 %v303, %v306
        %v309 = vand.u32 2147483647, %v308
        %v311 = vrot.slane %v309, 1
        %v313 = vadd.f32 %v309, %v311
        %v314 = vrot.slane %v309, 2
        %v316 = vadd.f32 %v313, %v314
        %v317 = vrot.slane %v309, 3
        %v319 = vadd.f32 %v316, %v317
        %v320 = vmul.f32 %v319, %v304
        %vm321 = vcmask 1040384
        %v322 = vsel %vm321, %v320, 0.0
        %323 = vadd.xlane.f32.xlu0 %v322
        %v324 = vpop.xlane.xlu0 %323
        %v325 = vrot.slane %v324, 4
        %v326 = vadd.f32 %v324, %v325
        %v327 = vrot.slane %v326, 2
        %v328 = vadd.f32 %v326, %v327
        %v329 = vrot.slane %v328, 1
        %v330 = vadd.f32 %v328, %v329
        %s331 = vtos %v330
        %v332 = vmul.f32 %v303, 0.5
        %v334 = vrot.slane %v332, 2
        %v336 = vsub.f32 %v303, %v334
        %v337 = vadd.f32 %v303, %v334
        %v338 = vsub.f32 %v337, %v336
        %v340 = vrot.slane %v338, 1
        %v342 = vmul.f32 %v338, %v340
        %v344 = vrot.slane %v337, 4
        %v346 = vmin.f32 %v337, %v344
        %v348 = vrot.slane %v336, 4
        %v350 = vmax.f32 %v336, %v348
        %v351 = vsub.f32 %v346, %v350
        %v352 = vmax.f32 %v351, 0.0
        %v354 = vrot.slane %v352, 1
        %v356 = vmul.f32 %v352, %v354
        %v358 = vrot.slane %v342, 4
        %v360 = vadd.f32 %v342, %v358
        %v361 = vsub.f32 %v360, %v356
        %v362 = vadd.f32 %v361, 1e-07
        %v363 = vrcp.pop %v362
        %v364 = vmul.f32 %v356, %v363
        %v365 = vmax.f32 %v337, %v344
        %v366 = vmin.f32 %v336, %v348
        %v367 = vsub.f32 %v365, %v366
        %v368 = vmax.f32 %v367, 0.0
        %v370 = vrot.slane %v368, 1
        %v372 = vmul.f32 %v368, %v370
        %v373 = vsub.f32 %v372, %v361
        %v374 = vadd.f32 %v372, 1e-07
        %v375 = vrcp.pop %v374
        %v376 = vmul.f32 %v373, %v375
        %v377 = vsub.f32 %v364, %v376
        %v378 = vsub.f32 1.0, %v377
        %v379 = vmul.f32 %v378, %v304
        %v380 = vsel %vm321, %v379, 0.0
        %381 = vadd.xlane.f32.xlu0 %v380
        %v382 = vpop.xlane.xlu0 %381
        %v383 = vrot.slane %v382, 4
        %v384 = vadd.f32 %v382, %v383
        %v385 = vrot.slane %v384, 2
        %v386 = vadd.f32 %v384, %v385
        %v387 = vrot.slane %v386, 1
        %v388 = vadd.f32 %v386, %v387
        %s389 = vtos %v388
        %v390 = vld [vmem:[%s182] sm:$0xff]
        %vm391 = vcmp.eq.s32.totalorder %v278, 5
        %v392 = vstv %s331
        %v393 = vsel %vm391, %v392, 0.0
        %vm394 = vcmp.eq.s32.totalorder %v278, 6
        %v395 = vstv %s389
        %v396 = vsel %vm394, %v395, 0.0
        %v397 = vadd.f32 %v393, %v396
        %v398 = vadd.f32 %v390, %v397
        %399 = vst [vmem:[%s182] sm:$0xff] %v398
      $region36: #{_detr_losses_jit.1} parent=31 // pred_fallthru
        _
      %p400 = scmp.lt.s32.totalorder %s14, 1
      %s401 = scalar_select %p400, %s14, 1
      %s402 = smul.addr %s401, 8
      %s403 = scalar_lea.vmem %s3, %s402
      // Predicated region
      $region37: #{_detr_losses_jit.1} parent=31 // pred_check
        %p404 = pneg %p105
      $region38: #{_detr_losses_jit.1} parent=31 // pred_check_branch
        %406 = sbr.rel (%p404) target = $region40
      $region39: #{_detr_losses_jit.1} parent=31 // pred_region
        _
      $region40: #{_detr_losses_jit.1} parent=31 // pred_fallthru
        _
    $region32: #{_detr_losses_jit.1} parent=5 // pred_fallthru
      _
    %p407 = scmp.le.s32.totalorder 2, %s9
    // Predicated region
    $region41: #{_detr_losses_jit.1} parent=5 // pred_check
      %p408 = pneg %p407
    $region42: #{_detr_losses_jit.1} parent=5 // pred_check_branch
      %410 = sbr.rel (%p408) target = $region44
    $region43: #{_detr_losses_jit.1} parent=5 // pred_region
      %s411 = ssub.s32 %s9, 2
      // Predicated region
      $region45: #{_detr_losses_jit.1} parent=43 // pred_check
        %p412 = pneg %p111
      $region46: #{_detr_losses_jit.1} parent=43 // pred_check_branch
        %414 = sbr.rel (%p412) target = $region48
      $region47: #{_detr_losses_jit.1} parent=43 // pred_region
        %p415 = scmp.lt.s32.totalorder %s15, 1
        %s416 = scalar_select %p415, %s15, 1
        %s417 = smul.addr %s416, 8
        %s418 = scalar_lea.vmem %s3, %s417
      $region48: #{_detr_losses_jit.1} parent=43 // pred_fallthru
        _
    $region44: #{_detr_losses_jit.1} parent=5 // pred_fallthru
      _
  $region6: #{_detr_losses_jit.1} parent=0 // loop_footer
    %s13 = sadd.s32 1, %s9
  $region7: #{_detr_losses_jit.1} parent=0 // loop_footer_branch
    %8 = sbr.rel target = $region3
  $region8: #{_detr_losses_jit.1} parent=0 // loop_exit
    _

</llo_original>
